<compile_context>
chip_gen: v7x
topology: tpu7x:2x2x1
jax: 0.10.0
libtpu: 0.0.40
codegen_flags: <defaults>
</compile_context>

<pallas_src>
import functools

import jax
import jax.numpy as jnp
from jax.experimental import pallas as pl
from jax.experimental.pallas import tpu as pltpu


def _round_up(x, m):
    return ((x + m - 1) // m) * m


def _dice_kernel(x_ref, t_ref, out_ref, inter_acc, p_acc, oh_acc, *,
                 hw, tiles_per_chunk, num_classes):
    chunk = pl.program_id(1)
    t_idx = pl.program_id(2)
    tile_n = x_ref.shape[-1]

    @pl.when(t_idx == 0)
    def _():
        inter_acc[...] = jnp.zeros_like(inter_acc)
        p_acc[...] = jnp.zeros_like(p_acc)
        oh_acc[...] = jnp.zeros_like(oh_acc)

    x = x_ref[0].astype(jnp.float32)    # (C, TN) logits, channels on sublanes
    t = t_ref[0]                        # (1, TN) int32 labels

    # Validity mask for ragged / clamped tiles (pixels on the lane axis).
    g_tile = chunk * tiles_per_chunk + t_idx
    col = g_tile * tile_n + jax.lax.broadcasted_iota(jnp.int32, (1, tile_n), 1)
    valid = col < hw                    # (1, TN) bool
    vmask = valid.astype(jnp.float32)

    # Zero garbage logits in masked columns before exp (avoids inf/NaN).
    x = jnp.where(valid, x, 0.0)

    # Softmax statistics over the channel (sublane) axis; the full (C, TN)
    # softmax is never materialized.
    m = jnp.max(x, axis=0, keepdims=True)                 # (1, TN)  XLU
    e = jnp.exp(x - m)                                    # (C, TN)  EUP
    s = jnp.sum(e, axis=0, keepdims=True)                 # (1, TN)  XLU

    # Intersection numerator: exp at the target channel (zero if out of range).
    cls = jax.lax.broadcasted_iota(jnp.int32, x.shape, 0)
    num = jnp.sum(jnp.where(cls == t, e, 0.0), axis=0, keepdims=True)

    r = pl.reciprocal(s, approx=True)                     # EUP slot
    r = r * (2.0 - s * r)      # one Newton step -> full f32 accuracy, cheap VPU
    rm = r * vmask

    # Lane-width accumulation only; scalar collapse happens once per chunk.
    inter_acc[...] += num * rm                            # sum_c softmax*onehot
    p_acc[...] += s * rm                                  # sum_c softmax
    # One-hot channel sum: 1 iff the label is in [0, C) (e.g. 255 -> 0).
    oh_acc[...] += jnp.where((t >= 0) & (t < num_classes) & valid, 1.0, 0.0)

    @pl.when(t_idx == pl.num_programs(2) - 1)
    def _():
        i_sum = jnp.sum(inter_acc[...])
        p_sum = jnp.sum(p_acc[...])
        o_sum = jnp.sum(oh_acc[...])
        # Pack the three partial sums into a full (8, 128) slab so the output
        # store is a single unmasked lane-dense write.
        sub = jax.lax.broadcasted_iota(jnp.int32, (8, 128), 0)
        lane = jax.lax.broadcasted_iota(jnp.int32, (8, 128), 1)
        slab = jnp.where((sub == 0) & (lane == 0), i_sum, 0.0)
        slab = slab + jnp.where((sub == 0) & (lane == 1), p_sum, 0.0)
        slab = slab + jnp.where((sub == 0) & (lane == 2), o_sum, 0.0)
        out_ref[0, 0] = slab


def soft_dice_loss(inputs, targets, *, num_classes=21, ignore_index=255,
                   smooth=1.0, reduction="mean", tile_n=16384):
    """inputs: [B, C, H, W] float logits; targets: [B, H, W] int labels."""
    # NOTE: ignore_index is stored on the PyTorch module but never used in its
    # forward(), so it is intentionally unused here as well.
    del ignore_index
    B, C, H, W = inputs.shape
    assert C == num_classes
    hw = H * W

    # Free reshapes (no transpose, no pad, dtype passed through unchanged):
    # NCHW -> [B, C, HW], [B, 1, HW].  Pixels land on the lane axis.
    x = inputs.reshape(B, C, hw)
    t = targets.reshape(B, 1, hw).astype(jnp.int32)

    # Pixel tile size: multiple of 128 and <= HW (or == HW for tiny spatial
    # sizes) so BlockSpecs always satisfy TPU tiling rules.
    if hw % 128 == 0:
        tile_n = min(_round_up(tile_n, 128), hw)
    elif hw > 128:
        tile_n = min(_round_up(tile_n, 128), (hw // 128) * 128)
    else:
        tile_n = hw
    n_tiles = pl.cdiv(hw, tile_n)

    # Split the pixel range onto a second "parallel" axis when the batch alone
    # cannot fill both v7x TensorCores (pure loop / no-op on 1-TC parts).
    n_split = 2 if (B % 2 == 1 and n_tiles >= 2) else 1
    tiles_per_chunk = pl.cdiv(n_tiles, n_split)

    if n_split == 1:
        def pix_idx(b, c, i):
            return i
    else:
        def pix_idx(b, c, i):
            # Clamp over-hanging tiles of the last chunk; the kernel masks
            # them to zero contribution via the `valid` mask.
            return jnp.minimum(c * tiles_per_chunk + i, n_tiles - 1)

    kernel = functools.partial(_dice_kernel, hw=hw,
                               tiles_per_chunk=tiles_per_chunk,
                               num_classes=num_classes)

    partials = pl.pallas_call(
        kernel,
        out_shape=jax.ShapeDtypeStruct((B, n_split, 8, 128), jnp.float32),
        grid_spec=pltpu.PrefetchScalarGridSpec(
            num_scalar_prefetch=0,
            grid=(B, n_split, tiles_per_chunk),
            in_specs=[
                pl.BlockSpec((1, C, tile_n),
                             lambda b, c, i: (b, 0, pix_idx(b, c, i))),
                pl.BlockSpec((1, 1, tile_n),
                             lambda b, c, i: (b, 0, pix_idx(b, c, i))),
            ],
            out_specs=pl.BlockSpec((1, 1, 8, 128),
                                   lambda b, c, i: (b, c, 0, 0)),
            scratch_shapes=[
                pltpu.VMEM((1, tile_n), jnp.float32),  # intersection partial
                pltpu.VMEM((1, tile_n), jnp.float32),  # softmax-sum partial
                pltpu.VMEM((1, tile_n), jnp.float32),  # one-hot-sum partial
            ],
        ),
        compiler_params=pltpu.CompilerParams(
            dimension_semantics=("parallel", "parallel", "arbitrary")),
    )(x, t)

    # Combine per-(batch, chunk) partial sums (f32) and form the dice loss.
    sums = jnp.sum(partials[:, :, 0, 0:3], axis=(0, 1))
    i_sum, p_sum, o_sum = sums[0], sums[1], sums[2]
    dice = (2.0 * i_sum + float(smooth)) / (p_sum + o_sum + float(smooth))
    loss = 1.0 - dice
    if reduction == "mean":
        # mean() of a scalar is a no-op (matches the PyTorch module).
        loss = jnp.mean(loss)
    return loss


def _reference(inputs, targets, num_classes=21, smooth=1.0):
    p = jax.nn.softmax(inputs.astype(jnp.float32), axis=1)
    oh = jax.nn.one_hot(targets, num_classes, dtype=jnp.float32)
    oh = jnp.transpose(oh, (0, 3, 1, 2))
    inter = p * oh
    dice = (2.0 * inter.sum() + smooth) / (p.sum() + oh.sum() + smooth)
    return 1.0 - dice


if __name__ == "__main__":
    C, H, W = 21, 24, 24   # H*W = 576: exercises ragged-tail masking
    key = jax.random.PRNGKey(0)
    k1, k2, k3, k4 = jax.random.split(key, 4)

    # B=2, f32, explicit small tile: multi-tile accumulation + ragged tail.
    logits = jax.random.normal(k1, (2, C, H, W), dtype=jnp.float32)
    labels = jax.random.randint(k2, (2, H, W), 0, C, dtype=jnp.int32)
    ref = _reference(logits, labels, num_classes=C, smooth=1.0)
    out = jax.block_until_ready(
        soft_dice_loss(logits, labels, num_classes=C, smooth=1.0, tile_n=256))
    assert jnp.allclose(out, ref, rtol=1e-5, atol=1e-5), (out, ref)

    # Default (large) tile path.
    out2 = jax.block_until_ready(
        soft_dice_loss(logits, labels, num_classes=C, smooth=1.0))
    assert jnp.allclose(out2, ref, rtol=1e-5, atol=1e-5), (out2, ref)

    # B=1: exercises the 2-way parallel pixel split (dual-TC path on v7x),
    # including the clamped + fully-masked over-hanging tile.
    logits1 = jax.random.normal(k3, (1, C, H, W), dtype=jnp.float32)
    labels1 = jax.random.randint(k4, (1, H, W), 0, C, dtype=jnp.int32)
    ref1 = _reference(logits1, labels1, num_classes=C, smooth=1.0)
    out3 = jax.block_until_ready(
        soft_dice_loss(logits1, labels1, num_classes=C, smooth=1.0, tile_n=256))
    assert jnp.allclose(out3, ref1, rtol=1e-5, atol=1e-5), (out3, ref1)

    # bf16 logits pass straight through the wrapper (halves the HBM stream);
    # the kernel upcasts to f32 internally.
    logits_bf16 = logits.astype(jnp.bfloat16)
    ref_bf16 = _reference(logits_bf16, labels, num_classes=C, smooth=1.0)
    out4 = jax.block_until_ready(
        soft_dice_loss(logits_bf16, labels, num_classes=C, smooth=1.0))
    assert jnp.allclose(out4, ref_bf16, rtol=5e-5, atol=5e-5), (out4, ref_bf16)

    print("KERNEL_OK")
</pallas_src>

<mosaic_0001>
module attributes {stable_mosaic.version = 11 : i64} {
  func.func @_dice_kernel(%arg0: i32, %arg1: i32, %arg2: i32, %arg3: memref<1x21x256xf32, #tpu.memory_space<vmem>>, %arg4: memref<1x1x256xi32, #tpu.memory_space<vmem>>, %arg5: memref<1x1x8x128xf32, #tpu.memory_space<vmem>>, %arg6: memref<1x256xf32, #tpu.memory_space<vmem>>, %arg7: memref<1x256xf32, #tpu.memory_space<vmem>>, %arg8: memref<1x256xf32, #tpu.memory_space<vmem>>) attributes {dimension_semantics = [#tpu.dimension_semantics<parallel>, #tpu.dimension_semantics<parallel>, #tpu.dimension_semantics<arbitrary>], iteration_bounds = array<i64: 2, 1, 3>, scalar_prefetch = 0 : i64, scratch_operands = 3 : i64, tpu.core_type = #tpu.core_type<tc>, window_params = [{transform_indices = @transform_0, window_bounds = array<i64: 1, 21, 256>}, {transform_indices = @transform_1, window_bounds = array<i64: 1, 1, 256>}, {transform_indices = @transform_2, window_bounds = array<i64: 1, 1, 8, 128>}]} {
    %c0_i32 = arith.constant 0 : i32
    %0 = arith.cmpi eq, %arg2, %c0_i32 : i32
    %1 = arith.extui %0 : i1 to i32
    %c0_i32_0 = arith.constant 0 : i32
    %2 = arith.cmpi ne, %1, %c0_i32_0 : i32
    scf.if %2 {
      %cst_27 = arith.constant 0.000000e+00 : f32
      %64 = vector.broadcast %cst_27 : f32 to vector<1x256xf32>
      %c0_28 = arith.constant 0 : index
      %c0_29 = arith.constant 0 : index
      %65 = vector.load %arg6[%c0_28, %c0_29] : memref<1x256xf32, #tpu.memory_space<vmem>>, vector<1x256xf32>
      tpu.vector_store %arg6[%c0_28, %c0_29], %64 {strides = array<i32>} : memref<1x256xf32, #tpu.memory_space<vmem>>, vector<1x256xf32>,
      %cst_30 = arith.constant 0.000000e+00 : f32
      %66 = vector.broadcast %cst_30 : f32 to vector<1x256xf32>
      %c0_31 = arith.constant 0 : index
      %c0_32 = arith.constant 0 : index
      %67 = vector.load %arg7[%c0_31, %c0_32] : memref<1x256xf32, #tpu.memory_space<vmem>>, vector<1x256xf32>
      tpu.vector_store %arg7[%c0_31, %c0_32], %66 {strides = array<i32>} : memref<1x256xf32, #tpu.memory_space<vmem>>, vector<1x256xf32>,
      %cst_33 = arith.constant 0.000000e+00 : f32
      %68 = vector.broadcast %cst_33 : f32 to vector<1x256xf32>
      %c0_34 = arith.constant 0 : index
      %c0_35 = arith.constant 0 : index
      %69 = vector.load %arg8[%c0_34, %c0_35] : memref<1x256xf32, #tpu.memory_space<vmem>>, vector<1x256xf32>
      tpu.vector_store %arg8[%c0_34, %c0_35], %68 {strides = array<i32>} : memref<1x256xf32, #tpu.memory_space<vmem>>, vector<1x256xf32>,
    } else {
    }
    %c0 = arith.constant 0 : index
    %c0_1 = arith.constant 0 : index
    %c0_2 = arith.constant 0 : index
    %3 = vector.load %arg3[%c0, %c0_1, %c0_2] : memref<1x21x256xf32, #tpu.memory_space<vmem>>, vector<1x21x256xf32>
    %4 = vector.shape_cast %3 : vector<1x21x256xf32> to vector<21x256xf32>
    %c0_3 = arith.constant 0 : index
    %c0_4 = arith.constant 0 : index
    %c0_5 = arith.constant 0 : index
    %5 = vector.load %arg4[%c0_3, %c0_4, %c0_5] : memref<1x1x256xi32, #tpu.memory_space<vmem>>, vector<1x1x256xi32>
    %6 = vector.shape_cast %5 : vector<1x1x256xi32> to vector<1x256xi32>
    %c3_i32 = arith.constant 3 : i32
    %7 = arith.muli %arg1, %c3_i32 : i32
    %8 = arith.addi %7, %arg2 : i32
    %c256_i32 = arith.constant 256 : i32
    %9 = arith.muli %8, %c256_i32 : i32
    %10 = tpu.iota {dimensions = array<i32: 1>} : vector<1x256xi32>
    %11 = vector.broadcast %9 : i32 to vector<1x256xi32>
    %12 = arith.addi %11, %10 : vector<1x256xi32>
    %c576_i32 = arith.constant 576 : i32
    %13 = vector.broadcast %c576_i32 : i32 to vector<1x256xi32>
    %14 = arith.cmpi slt, %12, %13 : vector<1x256xi32>
    %15 = arith.extui %14 : vector<1x256xi1> to vector<1x256xi32>
    %16 = arith.sitofp %15 : vector<1x256xi32> to vector<1x256xf32>
    %cst = arith.constant 0.000000e+00 : f32
    %17 = vector.shape_cast %14 : vector<1x256xi1> to vector<1x256xi1>
    %18 = vector.broadcast %17 : vector<1x256xi1> to vector<21x256xi1>
    %19 = vector.broadcast %cst : f32 to vector<21x256xf32>
    %20 = arith.select %18, %4, %19 : vector<21x256xi1>, vector<21x256xf32>
    %cst_6 = arith.constant dense<0xFF800000> : vector<256xf32>
    %21 = vector.multi_reduction <maximumf>, %20, %cst_6 [0] : vector<21x256xf32> to vector<256xf32>
    %22 = vector.shape_cast %21 : vector<256xf32> to vector<1x256xf32>
    %23 = vector.broadcast %22 : vector<1x256xf32> to vector<21x256xf32>
    %24 = arith.subf %20, %23 : vector<21x256xf32>
    %25 = math.exp %24 : vector<21x256xf32>
    %cst_7 = arith.constant dense<0.000000e+00> : vector<256xf32>
    %26 = vector.multi_reduction <add>, %25, %cst_7 [0] : vector<21x256xf32> to vector<256xf32>
    %27 = vector.shape_cast %26 : vector<256xf32> to vector<1x256xf32>
    %28 = tpu.iota {dimensions = array<i32: 0>} : vector<21x256xi32>
    %29 = vector.broadcast %6 : vector<1x256xi32> to vector<21x256xi32>
    %30 = arith.cmpi eq, %28, %29 : vector<21x256xi32>
    %cst_8 = arith.constant 0.000000e+00 : f32
    %31 = vector.broadcast %cst_8 : f32 to vector<21x256xf32>
    %32 = arith.select %30, %25, %31 : vector<21x256xi1>, vector<21x256xf32>
    %cst_9 = arith.constant dense<0.000000e+00> : vector<256xf32>
    %33 = vector.multi_reduction <add>, %32, %cst_9 [0] : vector<21x256xf32> to vector<256xf32>
    %34 = vector.shape_cast %33 : vector<256xf32> to vector<1x256xf32>
    %35 = tpu.reciprocal %27 {approx = true} : vector<1x256xf32> -> vector<1x256xf32>
    %36 = arith.mulf %27, %35 : vector<1x256xf32>
    %cst_10 = arith.constant 2.000000e+00 : f32
    %37 = vector.broadcast %cst_10 : f32 to vector<1x256xf32>
    %38 = arith.subf %37, %36 : vector<1x256xf32>
    %39 = arith.mulf %35, %38 : vector<1x256xf32>
    %40 = arith.mulf %39, %16 : vector<1x256xf32>
    %c0_11 = arith.constant 0 : index
    %c0_12 = arith.constant 0 : index
    %41 = vector.load %arg6[%c0_11, %c0_12] : memref<1x256xf32, #tpu.memory_space<vmem>>, vector<1x256xf32>
    %42 = arith.mulf %34, %40 : vector<1x256xf32>
    %43 = arith.addf %41, %42 : vector<1x256xf32>
    %c0_13 = arith.constant 0 : index
    %c0_14 = arith.constant 0 : index
    %44 = vector.load %arg6[%c0_13, %c0_14] : memref<1x256xf32, #tpu.memory_space<vmem>>, vector<1x256xf32>
    tpu.vector_store %arg6[%c0_13, %c0_14], %43 {strides = array<i32>} : memref<1x256xf32, #tpu.memory_space<vmem>>, vector<1x256xf32>,
    %c0_15 = arith.constant 0 : index
    %c0_16 = arith.constant 0 : index
    %45 = vector.load %arg7[%c0_15, %c0_16] : memref<1x256xf32, #tpu.memory_space<vmem>>, vector<1x256xf32>
    %46 = arith.mulf %27, %40 : vector<1x256xf32>
    %47 = arith.addf %45, %46 : vector<1x256xf32>
    %c0_17 = arith.constant 0 : index
    %c0_18 = arith.constant 0 : index
    %48 = vector.load %arg7[%c0_17, %c0_18] : memref<1x256xf32, #tpu.memory_space<vmem>>, vector<1x256xf32>
    tpu.vector_store %arg7[%c0_17, %c0_18], %47 {strides = array<i32>} : memref<1x256xf32, #tpu.memory_space<vmem>>, vector<1x256xf32>,
    %c0_19 = arith.constant 0 : index
    %c0_20 = arith.constant 0 : index
    %49 = vector.load %arg8[%c0_19, %c0_20] : memref<1x256xf32, #tpu.memory_space<vmem>>, vector<1x256xf32>
    %c0_i32_21 = arith.constant 0 : i32
    %50 = vector.broadcast %c0_i32_21 : i32 to vector<1x256xi32>
    %51 = arith.cmpi sge, %6, %50 : vector<1x256xi32>
    %c21_i32 = arith.constant 21 : i32
    %52 = vector.broadcast %c21_i32 : i32 to vector<1x256xi32>
    %53 = arith.cmpi slt, %6, %52 : vector<1x256xi32>
    %54 = arith.andi %51, %53 : vector<1x256xi1>
    %55 = arith.andi %54, %14 : vector<1x256xi1>
    %cst_22 = arith.constant 1.000000e+00 : f32
    %cst_23 = arith.constant 0.000000e+00 : f32
    %56 = vector.broadcast %cst_22 : f32 to vector<1x256xf32>
    %57 = vector.broadcast %cst_23 : f32 to vector<1x256xf32>
    %58 = arith.select %55, %56, %57 : vector<1x256xi1>, vector<1x256xf32>
    %59 = arith.addf %49, %58 : vector<1x256xf32>
    %c0_24 = arith.constant 0 : index
    %c0_25 = arith.constant 0 : index
    %60 = vector.load %arg8[%c0_24, %c0_25] : memref<1x256xf32, #tpu.memory_space<vmem>>, vector<1x256xf32>
    tpu.vector_store %arg8[%c0_24, %c0_25], %59 {strides = array<i32>} : memref<1x256xf32, #tpu.memory_space<vmem>>, vector<1x256xf32>,
    %c2_i32 = arith.constant 2 : i32
    %61 = arith.cmpi eq, %arg2, %c2_i32 : i32
    %62 = arith.extui %61 : i1 to i32
    %c0_i32_26 = arith.constant 0 : i32
    %63 = arith.cmpi ne, %62, %c0_i32_26 : i32
    scf.if %63 {
      %c0_27 = arith.constant 0 : index
      %c0_28 = arith.constant 0 : index
      %64 = vector.load %arg6[%c0_27, %c0_28] : memref<1x256xf32, #tpu.memory_space<vmem>>, vector<1x256xf32>
      %65 = vector.shape_cast %64 : vector<1x256xf32> to vector<1x1x256xf32>
      %cst_29 = arith.constant dense<0.000000e+00> : vector<1xf32>
      %66 = vector.multi_reduction <add>, %65, %cst_29 [1, 2] : vector<1x1x256xf32> to vector<1xf32>
      %67 = vector.shape_cast %66 : vector<1xf32> to vector<1x1x1xf32>
      %68 = vector.extract %67[0, 0, 0] : f32 from vector<1x1x1xf32>
      %c0_30 = arith.constant 0 : index
      %c0_31 = arith.constant 0 : index
      %69 = vector.load %arg7[%c0_30, %c0_31] : memref<1x256xf32, #tpu.memory_space<vmem>>, vector<1x256xf32>
      %70 = vector.shape_cast %69 : vector<1x256xf32> to vector<1x1x256xf32>
      %cst_32 = arith.constant dense<0.000000e+00> : vector<1xf32>
      %71 = vector.multi_reduction <add>, %70, %cst_32 [1, 2] : vector<1x1x256xf32> to vector<1xf32>
      %72 = vector.shape_cast %71 : vector<1xf32> to vector<1x1x1xf32>
      %73 = vector.extract %72[0, 0, 0] : f32 from vector<1x1x1xf32>
      %c0_33 = arith.constant 0 : index
      %c0_34 = arith.constant 0 : index
      %74 = vector.load %arg8[%c0_33, %c0_34] : memref<1x256xf32, #tpu.memory_space<vmem>>, vector<1x256xf32>
      %75 = vector.shape_cast %74 : vector<1x256xf32> to vector<1x1x256xf32>
      %cst_35 = arith.constant dense<0.000000e+00> : vector<1xf32>
      %76 = vector.multi_reduction <add>, %75, %cst_35 [1, 2] : vector<1x1x256xf32> to vector<1xf32>
      %77 = vector.shape_cast %76 : vector<1xf32> to vector<1x1x1xf32>
      %78 = vector.extract %77[0, 0, 0] : f32 from vector<1x1x1xf32>
      %79 = tpu.iota {dimensions = array<i32: 0>} : vector<8x128xi32>
      %80 = tpu.iota {dimensions = array<i32: 1>} : vector<8x128xi32>
      %c0_i32_36 = arith.constant 0 : i32
      %81 = vector.broadcast %c0_i32_36 : i32 to vector<8x128xi32>
      %82 = arith.cmpi eq, %79, %81 : vector<8x128xi32>
      %c0_i32_37 = arith.constant 0 : i32
      %83 = vector.broadcast %c0_i32_37 : i32 to vector<8x128xi32>
      %84 = arith.cmpi eq, %80, %83 : vector<8x128xi32>
      %85 = arith.andi %82, %84 : vector<8x128xi1>
      %cst_38 = arith.constant 0.000000e+00 : f32
      %86 = vector.broadcast %68 : f32 to vector<8x128xf32>
      %87 = vector.broadcast %cst_38 : f32 to vector<8x128xf32>
      %88 = arith.select %85, %86, %87 : vector<8x128xi1>, vector<8x128xf32>
      %c0_i32_39 = arith.constant 0 : i32
      %89 = vector.broadcast %c0_i32_39 : i32 to vector<8x128xi32>
      %90 = arith.cmpi eq, %79, %89 : vector<8x128xi32>
      %c1_i32 = arith.constant 1 : i32
      %91 = vector.broadcast %c1_i32 : i32 to vector<8x128xi32>
      %92 = arith.cmpi eq, %80, %91 : vector<8x128xi32>
      %93 = arith.andi %90, %92 : vector<8x128xi1>
      %cst_40 = arith.constant 0.000000e+00 : f32
      %94 = vector.broadcast %73 : f32 to vector<8x128xf32>
      %95 = vector.broadcast %cst_40 : f32 to vector<8x128xf32>
      %96 = arith.select %93, %94, %95 : vector<8x128xi1>, vector<8x128xf32>
      %97 = arith.addf %88, %96 : vector<8x128xf32>
      %c0_i32_41 = arith.constant 0 : i32
      %98 = vector.broadcast %c0_i32_41 : i32 to vector<8x128xi32>
      %99 = arith.cmpi eq, %79, %98 : vector<8x128xi32>
      %c2_i32_42 = arith.constant 2 : i32
      %100 = vector.broadcast %c2_i32_42 : i32 to vector<8x128xi32>
      %101 = arith.cmpi eq, %80, %100 : vector<8x128xi32>
      %102 = arith.andi %99, %101 : vector<8x128xi1>
      %cst_43 = arith.constant 0.000000e+00 : f32
      %103 = vector.broadcast %78 : f32 to vector<8x128xf32>
      %104 = vector.broadcast %cst_43 : f32 to vector<8x128xf32>
      %105 = arith.select %102, %103, %104 : vector<8x128xi1>, vector<8x128xf32>
      %106 = arith.addf %97, %105 : vector<8x128xf32>
      %c0_44 = arith.constant 0 : index
      %c0_45 = arith.constant 0 : index
      %c0_46 = arith.constant 0 : index
      %c0_47 = arith.constant 0 : index
      %107 = vector.load %arg5[%c0_44, %c0_45, %c0_46, %c0_47] : memref<1x1x8x128xf32, #tpu.memory_space<vmem>>, vector<1x1x8x128xf32>
      %108 = vector.shape_cast %107 : vector<1x1x8x128xf32> to vector<8x128xf32>
      %109 = vector.shape_cast %106 : vector<8x128xf32> to vector<1x1x8x128xf32>
      tpu.vector_store %arg5[%c0_44, %c0_45, %c0_46, %c0_47], %109 {strides = array<i32>} : memref<1x1x8x128xf32, #tpu.memory_space<vmem>>, vector<1x1x8x128xf32>,
    } else {
    }
    return
  }
  func.func @transform_0(%arg0: i32, %arg1: i32, %arg2: i32) -> (i32, i32, i32) {
    %c0_i32 = arith.constant 0 : i32
    %c0_i32_0 = arith.constant 0 : i32
    return %arg0, %c0_i32, %arg2 : i32, i32, i32
  }
  func.func @transform_1(%arg0: i32, %arg1: i32, %arg2: i32) -> (i32, i32, i32) {
    %c0_i32 = arith.constant 0 : i32
    %c0_i32_0 = arith.constant 0 : i32
    return %arg0, %c0_i32, %arg2 : i32, i32, i32
  }
  func.func @transform_2(%arg0: i32, %arg1: i32, %arg2: i32) -> (i32, i32, i32, i32) {
    %c0_i32 = arith.constant 0 : i32
    %c0_i32_0 = arith.constant 0 : i32
    %c0_i32_1 = arith.constant 0 : i32
    return %arg0, %arg1, %c0_i32, %c0_i32_0 : i32, i32, i32, i32
  }
}

</mosaic_0001>

<llo_original>
// kernel: tpu_custom_call.1
$region0: #{tpu_custom_call.1}
  #allocation0 [shape = 'u32[]', space=smem, size = 0x4, offset = 0x4, fixed_abs, tag = 'smem constant byte address 0x4 - core index']
  #allocation1 [shape = 'u32[144,128]{1,0:T(1,128)}', space=vmem, size = 0x12000, scoped, tag = 'internal scratch']
  #allocation2 [shape = 'f32[1,256]{1,0:T(1,128)}', space=vmem, size = 0x400, scoped, tag = 'scratch operand']
  #allocation3 [shape = 'f32[1,256]{1,0:T(1,128)}', space=vmem, size = 0x400, scoped, tag = 'scratch operand']
  #allocation4 [shape = 'f32[1,256]{1,0:T(1,128)}', space=vmem, size = 0x400, scoped, tag = 'scratch operand']
  %s0 = inlined_call_operand.vmem [shape: f32[2,21,576], index: 0, kind: input, shape index: {}]
  %s1 = inlined_call_operand.vmem [shape: s32[2,1,576], index: 1, kind: input, shape index: {}]
  %s2 = inlined_call_operand.hbm [shape: f32[2,1,8,128], index: 2, kind: output, shape index: {}]
  %s3 = sld [smem:[#allocation0]]
  $region115: #{tpu_custom_call.1} parent=0
    _
  %s5 = ssub.s32 1, %s3
  %s6 = scalar_select 0, %s5, %s3
  $region1: #{tpu_custom_call.1} parent=0
    #allocation5 [shape = 'u8[49152]{0}', space=vmem, size = 0xc000, scoped, tag = 'input window, operand 0']
    #allocation6 [shape = 'u8[8192]{0}', space=vmem, size = 0x2000, scoped, tag = 'output window, operand 0']
    #allocation7 [shape = 's32[2]{0}', space=sflag, size = 0x8, scoped, tag = 'scoped memory for tpu_custom_call.1']
    %7 = vsyncpa [#allocation7], 0
    %s8 = scalar_lea.sflag [#allocation7], 1
    %9 = vsyncpa %s8, 0
    loop: start=0, step=1, limit=8
    $region2: #{tpu_custom_call.1} parent=1 // loop_pre_header
      _
    $region3: #{tpu_custom_call.1} parent=1 // loop_header
      %s11 = sphi 0, %s15
      %p12 = scmp.ge.s32.totalorder %s11, 8
      %s18 = sphi 0, %s37
      %s19 = sphi 0, %s33
      %s20 = sphi 0, %s29
      %s21 = sphi 0, %s18
      %s22 = sphi 0, %s19
      %s23 = sphi 0, %s20
      %s24 = sphi 0, %s21
      %s25 = sphi 0, %s22
      %s26 = sphi 0, %s23
      %s42 = sphi 0, %s44
      %s45 = sphi 0, %s42
      %s46 = sphi 0, %s45
      %s62 = sphi 0, %s46
      %s70 = sphi 0, %s72
      %s73 = sphi 0, %s70
      %s74 = sphi 0, %s73
      %s90 = sphi 0, %s74
      %s98 = sphi 0, %s100
      %s101 = sphi 0, %s98
      %s102 = sphi 0, %s101
      %s118 = sphi 0, %s102
    $region4: #{tpu_custom_call.1} parent=1 // loop_header_branch
      %14 = sbr.rel (%p12) target = $region8
    $region5: #{tpu_custom_call.1} parent=1 // loop_body
      %s16 = ssub.s32 %s11, 1
      %s17 = ssub.s32 %s11, 2
      %s27 = sadd.s32 1, %s20
      %p28 = scmp.ge.s32.totalorder %s27, 3
      %s29 = scalar_select %p28, 0, %s27
      %s30 = sadd.s32 1, %s19
      %s31 = scalar_select %p28, %s30, %s19
      %p32 = scmp.ge.s32.totalorder %s31, 1
      %s33 = scalar_select %p32, 0, %s31
      %s34 = sadd.s32 1, %s18
      %s35 = scalar_select %p32, %s34, %s18
      %p36 = scmp.ge.s32.totalorder %s35, 2
      %s37 = scalar_select %p36, 0, %s35
      %s38 = ssub.s32 %s18, %s37
      %s39 = ssub.s32 %s20, %s29
      %s40 = sor.u32 %s38, %s39
      %p41 = scmp.eq.s32.totalorder %s40, 0
      %s43 = sadd.s32 %s42, 1
      %s44 = scalar_select %p41, %s42, %s43
      %p47 = pneg %p41
      %p48 = scmp.eq.s32.totalorder %s11, 5
      %p49 = por %p47, %p48
      %p50 = scmp.ne.s32.totalorder %s42, %s45
      %p51 = scmp.eq.s32.totalorder %s11, 0
      %p52 = por %p50, %p51
      %p53 = scmp.ne.s32.totalorder %s42, %s45
      %p54 = scmp.eq.s32.totalorder %s16, 5
      %p55 = por %p53, %p54
      %p56 = scmp.ne.s32.totalorder %s45, %s46
      %p57 = scmp.eq.s32.totalorder %s16, 0
      %p58 = por %p56, %p57
      %p59 = scmp.ne.s32.totalorder %s45, %s46
      %p60 = scmp.eq.s32.totalorder %s17, 5
      %p61 = por %p59, %p60
      %p63 = scmp.ne.s32.totalorder %s46, %s62
      %p64 = scmp.eq.s32.totalorder %s17, 0
      %p65 = por %p63, %p64
      %s66 = ssub.s32 %s18, %s37
      %s67 = ssub.s32 %s20, %s29
      %s68 = sor.u32 %s66, %s67
      %p69 = scmp.eq.s32.totalorder %s68, 0
      %s71 = sadd.s32 %s70, 1
      %s72 = scalar_select %p69, %s70, %s71
      %p75 = pneg %p69
      %p76 = scmp.eq.s32.totalorder %s11, 5
      %p77 = por %p75, %p76
      %p78 = scmp.ne.s32.totalorder %s70, %s73
      %p79 = scmp.eq.s32.totalorder %s11, 0
      %p80 = por %p78, %p79
      %p81 = scmp.ne.s32.totalorder %s70, %s73
      %p82 = scmp.eq.s32.totalorder %s16, 5
      %p83 = por %p81, %p82
      %p84 = scmp.ne.s32.totalorder %s73, %s74
      %p85 = scmp.eq.s32.totalorder %s16, 0
      %p86 = por %p84, %p85
      %p87 = scmp.ne.s32.totalorder %s73, %s74
      %p88 = scmp.eq.s32.totalorder %s17, 5
      %p89 = por %p87, %p88
      %p91 = scmp.ne.s32.totalorder %s74, %s90
      %p92 = scmp.eq.s32.totalorder %s17, 0
      %p93 = por %p91, %p92
      %s94 = ssub.s32 %s18, %s37
      %s95 = ssub.s32 %s19, %s33
      %s96 = sor.u32 %s94, %s95
      %p97 = scmp.eq.s32.totalorder %s96, 0
      %s99 = sadd.s32 %s98, 1
      %s100 = scalar_select %p97, %s98, %s99
      %p103 = pneg %p97
      %p104 = scmp.eq.s32.totalorder %s11, 5
      %p105 = por %p103, %p104
      %p106 = scmp.ne.s32.totalorder %s98, %s101
      %p107 = scmp.eq.s32.totalorder %s11, 0
      %p108 = por %p106, %p107
      %p109 = scmp.ne.s32.totalorder %s98, %s101
      %p110 = scmp.eq.s32.totalorder %s16, 5
      %p111 = por %p109, %p110
      %p112 = scmp.ne.s32.totalorder %s101, %s102
      %p113 = scmp.eq.s32.totalorder %s16, 0
      %p114 = por %p112, %p113
      %p115 = scmp.ne.s32.totalorder %s101, %s102
      %p116 = scmp.eq.s32.totalorder %s17, 5
      %p117 = por %p115, %p116
      %p119 = scmp.ne.s32.totalorder %s102, %s118
      %p120 = scmp.eq.s32.totalorder %s17, 0
      %p121 = por %p119, %p120
      %p122 = scmp.le.s32.totalorder 1, %s11
      %p123 = scmp.lt.s32.totalorder %s11, 7
      %p124 = pnand %p122, %p123
      %p125 = pneg %p124
      // Predicated region
      $region9: #{tpu_custom_call.1} parent=5 // pred_check
        _
      $region10: #{tpu_custom_call.1} parent=5 // pred_check_branch
        %127 = sbr.rel (%p124) target = $region12
      $region11: #{tpu_custom_call.1} parent=5 // pred_region
        %s128 = ssub.s32 %s11, 1
      $region12: #{tpu_custom_call.1} parent=5 // pred_fallthru
        _
      %p129 = scmp.lt.s32.totalorder %s11, 6
      // Predicated region
      $region13: #{tpu_custom_call.1} parent=5 // pred_check
        %p130 = pneg %p129
      $region14: #{tpu_custom_call.1} parent=5 // pred_check_branch
        %132 = sbr.rel (%p130) target = $region16
      $region15: #{tpu_custom_call.1} parent=5 // pred_region
        // Predicated region
        $region17: #{tpu_custom_call.1} parent=15 // pred_check
          %p133 = pneg %p52
        $region18: #{tpu_custom_call.1} parent=15 // pred_check_branch
          %135 = sbr.rel (%p133) target = $region20
        $region19: #{tpu_custom_call.1} parent=15 // pred_region
          %s136 = sand.u32 %s42, 1
          %s137 = sand.u32 %s42, 1
          %s138 = smul.addr %s137, 48
          %s139 = scalar_lea.vmem [#allocation5], %s138
          %s140 = smul.u32 2, %s20
          %s141 = ssub.s32 5, %s140
          %p142 = scmp.lt.s32.totalorder %s141, 2
          %s143 = scalar_select %p142, %s141, 2
          %s144 = smul.u32 384, %s143
          %p145 = scmp.ne.s32.totalorder 0, %s144
          %s146 = smul.addr %s18, 15
          %s147 = sadd.s32 %s140, %s146
          %s148 = smul.addr %s147, 8
          %s149 = scalar_lea.vmem %s0, %s148
          %s150 = smul.u32 %s143, 8
          // Predicated region
          $region21: #{tpu_custom_call.1} parent=19 // pred_check
            %p151 = pneg %p145
          $region22: #{tpu_custom_call.1} parent=19 // pred_check_branch
            %153 = sbr.rel (%p151) target = $region24
          $region23: #{tpu_custom_call.1} parent=19 // pred_region
            %p154 = scmp.lt.u32.totalorder %s150, 8
            %p155 = pneg %p154
            // Predicated region
            $region25: #{tpu_custom_call.1} parent=23 // pred_check
              _
            $region26: #{tpu_custom_call.1} parent=23 // pred_check_branch
              %157 = sbr.rel (%p154) target = $region28
            $region27: #{tpu_custom_call.1} parent=23 // pred_region
              %s176 = sand.u32 %s150, 7
              %p177 = scmp.eq.s32.totalorder %s176, 0
              // Predicated region
              $region40: #{tpu_custom_call.1} parent=27 // pred_check
                %p178 = pneg %p177
              $region41: #{tpu_custom_call.1} parent=27 // pred_check_branch
                %180 = sbr.rel (%p178) target = $region43
              $region42: #{tpu_custom_call.1} parent=27 // pred_region
                %s181 = sshrl.u32 %s150, 3
                %s182 = sdiv.u32.pop %s181, 24
                %s183 = srem.u32.pop %s181, 24
                // While loop
                $region44: #{tpu_custom_call.1} parent=42 // loop_pre_header
                  _
                $region45: #{tpu_custom_call.1} parent=42 // loop_header
                  %s187 = sphi 0, %s189
                  %p188 = scmp.ge.s32.totalorder %s187, %s182
                  %s192 = sphi 0, %s341
                  %s193 = sphi %s149, %s344
                  %s194 = sphi %s139, %s345
                $region46: #{tpu_custom_call.1} parent=42 // loop_header_branch
                  %191 = sbr.rel (%p188) target = $region50
                $region47: #{tpu_custom_call.1} parent=42 // loop_body
                  %v195 = vld [vmem:[%s193] sm:$0xff]
                  %196 = vst [vmem:[%s194] sm:$0xff] %v195
                  %v197 = vld [vmem:[%s193 + $0x8] sm:$0xff]
                  %198 = vst [vmem:[%s194 + $0x8] sm:$0xff] %v197
                  %v199 = vld [vmem:[%s193 + $0x10] sm:$0xff]
                  %200 = vst [vmem:[%s194 + $0x10] sm:$0xff] %v199
                  %v201 = vld [vmem:[%s193 + $0x18] sm:$0xff]
                  %202 = vst [vmem:[%s194 + $0x18] sm:$0xff] %v201
                  %v203 = vld [vmem:[%s193 + $0x20] sm:$0xff]
                  %204 = vst [vmem:[%s194 + $0x20] sm:$0xff] %v203
                  %v205 = vld [vmem:[%s193 + $0x28] sm:$0xff]
                  %206 = vst [vmem:[%s194 + $0x28] sm:$0xff] %v205
                  %v207 = vld [vmem:[%s193 + $0x30] sm:$0xff]
                  %208 = vst [vmem:[%s194 + $0x30] sm:$0xff] %v207
                  %v209 = vld [vmem:[%s193 + $0x38] sm:$0xff]
                  %210 = vst [vmem:[%s194 + $0x38] sm:$0xff] %v209
                  %v211 = vld [vmem:[%s193 + $0x40] sm:$0xff]
                  %212 = vst [vmem:[%s194 + $0x40] sm:$0xff] %v211
                  %v213 = vld [vmem:[%s193 + $0x48] sm:$0xff]
                  %214 = vst [vmem:[%s194 + $0x48] sm:$0xff] %v213
                  %v215 = vld [vmem:[%s193 + $0x50] sm:$0xff]
                  %216 = vst [vmem:[%s194 + $0x50] sm:$0xff] %v215
                  %v217 = vld [vmem:[%s193 + $0x58] sm:$0xff]
                  %218 = vst [vmem:[%s194 + $0x58] sm:$0xff] %v217
                  %v219 = vld [vmem:[%s193 + $0x60] sm:$0xff]
                  %220 = vst [vmem:[%s194 + $0x60] sm:$0xff] %v219
                  %v221 = vld [vmem:[%s193 + $0x68] sm:$0xff]
                  %222 = vst [vmem:[%s194 + $0x68] sm:$0xff] %v221
                  %v223 = vld [vmem:[%s193 + $0x70] sm:$0xff]
                  %224 = vst [vmem:[%s194 + $0x70] sm:$0xff] %v223
                  %v225 = vld [vmem:[%s193 + $0x78] sm:$0xff]
                  %226 = vst [vmem:[%s194 + $0x78] sm:$0xff] %v225
                  %v227 = vld [vmem:[%s193 + $0x80] sm:$0xff]
                  %228 = vst [vmem:[%s194 + $0x80] sm:$0xff] %v227
                  %v229 = vld [vmem:[%s193 + $0x88] sm:$0xff]
                  %230 = vst [vmem:[%s194 + $0x88] sm:$0xff] %v229
                  %v231 = vld [vmem:[%s193 + $0x90] sm:$0xff]
                  %232 = vst [vmem:[%s194 + $0x90] sm:$0xff] %v231
                  %v233 = vld [vmem:[%s193 + $0x98] sm:$0xff]
                  %234 = vst [vmem:[%s194 + $0x98] sm:$0xff] %v233
                  %v235 = vld [vmem:[%s193 + $0xa0] sm:$0xff]
                  %236 = vst [vmem:[%s194 + $0xa0] sm:$0xff] %v235
                  %v237 = vld [vmem:[%s193 + $0xa8] sm:$0xff]
                  %238 = vst [vmem:[%s194 + $0xa8] sm:$0xff] %v237
                  %v239 = vld [vmem:[%s193 + $0xb0] sm:$0xff]
                  %240 = vst [vmem:[%s194 + $0xb0] sm:$0xff] %v239
                  %v241 = vld [vmem:[%s193 + $0xb8] sm:$0xff]
                  %242 = vst [vmem:[%s194 + $0xb8] sm:$0xff] %v241
                  %v243 = vld [vmem:[%s193 + $0x28] sm:$0xff]
                  %244 = vst [vmem:[%s194 + $0x10] sm:$0xff] %v243
                  %v245 = vld [vmem:[%s193 + $0x30] sm:$0xff]
                  %246 = vst [vmem:[%s194 + $0x18] sm:$0xff] %v245
                  %v247 = vld [vmem:[%s193 + $0x38] sm:$0xff]
                  %248 = vst [vmem:[%s194 + $0x20] sm:$0xff] %v247
                  %v249 = vld [vmem:[%s193 + $0x40] sm:$0xff]
                  %250 = vst [vmem:[%s194 + $0x28] sm:$0xff] %v249
                  %v251 = vld [vmem:[%s193 + $0x48] sm:$0xff]
                  %252 = vst [vmem:[%s194 + $0x30] sm:$0xff] %v251
                  %v253 = vld [vmem:[%s193 + $0x50] sm:$0xff]
                  %254 = vst [vmem:[%s194 + $0x38] sm:$0xff] %v253
                  %v255 = vld [vmem:[%s193 + $0x58] sm:$0xff]
                  %256 = vst [vmem:[%s194 + $0x40] sm:$0xff] %v255
                  %v257 = vld [vmem:[%s193 + $0x60] sm:$0xff]
                  %258 = vst [vmem:[%s194 + $0x48] sm:$0xff] %v257
                  %v259 = vld [vmem:[%s193 + $0x68] sm:$0xff]
                  %260 = vst [vmem:[%s194 + $0x50] sm:$0xff] %v259
                  %v261 = vld [vmem:[%s193 + $0x70] sm:$0xff]
                  %262 = vst [vmem:[%s194 + $0x58] sm:$0xff] %v261
                  %v263 = vld [vmem:[%s193 + $0x78] sm:$0xff]
                  %264 = vst [vmem:[%s194 + $0x60] sm:$0xff] %v263
                  %v265 = vld [vmem:[%s193 + $0x80] sm:$0xff]
                  %266 = vst [vmem:[%s194 + $0x68] sm:$0xff] %v265
                  %v267 = vld [vmem:[%s193 + $0x88] sm:$0xff]
                  %268 = vst [vmem:[%s194 + $0x70] sm:$0xff] %v267
                  %v269 = vld [vmem:[%s193 + $0x90] sm:$0xff]
                  %270 = vst [vmem:[%s194 + $0x78] sm:$0xff] %v269
                  %v271 = vld [vmem:[%s193 + $0x98] sm:$0xff]
                  %272 = vst [vmem:[%s194 + $0x80] sm:$0xff] %v271
                  %v273 = vld [vmem:[%s193 + $0xa0] sm:$0xff]
                  %274 = vst [vmem:[%s194 + $0x88] sm:$0xff] %v273
                  %v275 = vld [vmem:[%s193 + $0xa8] sm:$0xff]
                  %276 = vst [vmem:[%s194 + $0x90] sm:$0xff] %v275
                  %v277 = vld [vmem:[%s193 + $0xb0] sm:$0xff]
                  %278 = vst [vmem:[%s194 + $0x98] sm:$0xff] %v277
                  %v279 = vld [vmem:[%s193 + $0xb8] sm:$0xff]
                  %280 = vst [vmem:[%s194 + $0xa0] sm:$0xff] %v279
                  %v281 = vld [vmem:[%s193 + $0xc0] sm:$0xff]
                  %282 = vst [vmem:[%s194 + $0xa8] sm:$0xff] %v281
                  %v283 = vld [vmem:[%s193 + $0xc8] sm:$0xff]
                  %284 = vst [vmem:[%s194 + $0xb0] sm:$0xff] %v283
                  %v285 = vld [vmem:[%s193 + $0xd0] sm:$0xff]
                  %286 = vst [vmem:[%s194 + $0xb8] sm:$0xff] %v285
                  %v287 = vld [vmem:[%s193 + $0xd8] sm:$0xff]
                  %288 = vst [vmem:[%s194 + $0xc0] sm:$0xff] %v287
                  %v289 = vld [vmem:[%s193 + $0xe0] sm:$0xff]
                  %290 = vst [vmem:[%s194 + $0xc8] sm:$0xff] %v289
                  %v291 = vld [vmem:[%s193 + $0x50] sm:$0xff]
                  %292 = vst [vmem:[%s194 + $0x20] sm:$0xff] %v291
                  %v293 = vld [vmem:[%s193 + $0x58] sm:$0xff]
                  %294 = vst [vmem:[%s194 + $0x28] sm:$0xff] %v293
                  %v295 = vld [vmem:[%s193 + $0x60] sm:$0xff]
                  %296 = vst [vmem:[%s194 + $0x30] sm:$0xff] %v295
                  %v297 = vld [vmem:[%s193 + $0x68] sm:$0xff]
                  %298 = vst [vmem:[%s194 + $0x38] sm:$0xff] %v297
                  %v299 = vld [vmem:[%s193 + $0x70] sm:$0xff]
                  %300 = vst [vmem:[%s194 + $0x40] sm:$0xff] %v299
                  %v301 = vld [vmem:[%s193 + $0x78] sm:$0xff]
                  %302 = vst [vmem:[%s194 + $0x48] sm:$0xff] %v301
                  %v303 = vld [vmem:[%s193 + $0x80] sm:$0xff]
                  %304 = vst [vmem:[%s194 + $0x50] sm:$0xff] %v303
                  %v305 = vld [vmem:[%s193 + $0x88] sm:$0xff]
                  %306 = vst [vmem:[%s194 + $0x58] sm:$0xff] %v305
                  %v307 = vld [vmem:[%s193 + $0x90] sm:$0xff]
                  %308 = vst [vmem:[%s194 + $0x60] sm:$0xff] %v307
                  %v309 = vld [vmem:[%s193 + $0x98] sm:$0xff]
                  %310 = vst [vmem:[%s194 + $0x68] sm:$0xff] %v309
                  %v311 = vld [vmem:[%s193 + $0xa0] sm:$0xff]
                  %312 = vst [vmem:[%s194 + $0x70] sm:$0xff] %v311
                  %v313 = vld [vmem:[%s193 + $0xa8] sm:$0xff]
                  %314 = vst [vmem:[%s194 + $0x78] sm:$0xff] %v313
                  %v315 = vld [vmem:[%s193 + $0xb0] sm:$0xff]
                  %316 = vst [vmem:[%s194 + $0x80] sm:$0xff] %v315
                  %v317 = vld [vmem:[%s193 + $0xb8] sm:$0xff]
                  %318 = vst [vmem:[%s194 + $0x88] sm:$0xff] %v317
                  %v319 = vld [vmem:[%s193 + $0xc0] sm:$0xff]
                  %320 = vst [vmem:[%s194 + $0x90] sm:$0xff] %v319
                  %v321 = vld [vmem:[%s193 + $0xc8] sm:$0xff]
                  %322 = vst [vmem:[%s194 + $0x98] sm:$0xff] %v321
                  %v323 = vld [vmem:[%s193 + $0xd0] sm:$0xff]
                  %324 = vst [vmem:[%s194 + $0xa0] sm:$0xff] %v323
                  %v325 = vld [vmem:[%s193 + $0xd8] sm:$0xff]
                  %326 = vst [vmem:[%s194 + $0xa8] sm:$0xff] %v325
                  %v327 = vld [vmem:[%s193 + $0xe0] sm:$0xff]
                  %328 = vst [vmem:[%s194 + $0xb0] sm:$0xff] %v327
                  %v329 = vld [vmem:[%s193 + $0xe8] sm:$0xff]
                  %330 = vst [vmem:[%s194 + $0xb8] sm:$0xff] %v329
                  %v331 = vld [vmem:[%s193 + $0xf0] sm:$0xff]
                  %332 = vst [vmem:[%s194 + $0xc0] sm:$0xff] %v331
                  %v333 = vld [vmem:[%s193 + $0xf8] sm:$0xff]
                  %334 = vst [vmem:[%s194 + $0xc8] sm:$0xff] %v333
                  %v335 = vld [vmem:[%s193 + $0x100] sm:$0xff]
                  %336 = vst [vmem:[%s194 + $0xd0] sm:$0xff] %v335
                  %v337 = vld [vmem:[%s193 + $0x108] sm:$0xff]
                  %338 = vst [vmem:[%s194 + $0xd8] sm:$0xff] %v337
                  %s339 = sadd.s32 1, %s192
                  %p340 = scmp.ge.s32.totalorder %s339, %s182
                  %s341 = scalar_select %p340, 0, %s339
                  %s342 = smul.u32 %s341, 192
                  %s343 = smul.u32 %s341, 192
                  %s344 = scalar_lea.vmem %s149, %s342
                  %s345 = scalar_lea.vmem %s139, %s343 [#allocation5]
                $region48: #{tpu_custom_call.1} parent=42 // loop_footer
                  %s189 = sadd.s32 %s187, 1
                $region49: #{tpu_custom_call.1} parent=42 // loop_footer_branch
                  %186 = sbr.rel target = $region45
                $region50: #{tpu_custom_call.1} parent=42 // loop_exit
                  _
                %s346 = sdiv.u32.pop %s181, 24
                %s347 = srem.u32.pop %s181, 24
                %s348 = smul.u32 %s346, 24
                %s349 = smul.u32 128, %s348
                %s350 = sshra.s32 %s349, 4
                %s351 = scalar_lea.vmem %s149, %s350
                %s352 = smul.u32 128, %s348
                %s353 = sshra.s32 %s352, 4
                %s354 = scalar_lea.vmem %s139, %s353 [#allocation5]
                // While loop
                $region51: #{tpu_custom_call.1} parent=42 // loop_pre_header
                  _
                $region52: #{tpu_custom_call.1} parent=42 // loop_header
                  %s358 = sphi 0, %s360
                  %p359 = scmp.ge.s32.totalorder %s358, %s347
                  %s363 = sphi 0, %s374
                  %s364 = sphi %s351, %s377
                  %s365 = sphi %s354, %s378
                $region53: #{tpu_custom_call.1} parent=42 // loop_header_branch
                  %362 = sbr.rel (%p359) target = $region57
                $region54: #{tpu_custom_call.1} parent=42 // loop_body
                  %v366 = vld [vmem:[%s364] sm:$0xff]
                  %367 = vst [vmem:[%s365] sm:$0xff] %v366
                  %v368 = vld [vmem:[%s364 + $0x28] sm:$0xff]
                  %369 = vst [vmem:[%s365 + $0x10] sm:$0xff] %v368
                  %v370 = vld [vmem:[%s364 + $0x50] sm:$0xff]
                  %371 = vst [vmem:[%s365 + $0x20] sm:$0xff] %v370
                  %s372 = sadd.s32 1, %s363
                  %p373 = scmp.ge.s32.totalorder %s372, %s347
                  %s374 = scalar_select %p373, 0, %s372
                  %s375 = smul.u32 %s374, 8
                  %s376 = smul.u32 %s374, 8
                  %s377 = scalar_lea.vmem %s351, %s375
                  %s378 = scalar_lea.vmem %s354, %s376 [#allocation5]
                $region55: #{tpu_custom_call.1} parent=42 // loop_footer
                  %s360 = sadd.s32 %s358, 1
                $region56: #{tpu_custom_call.1} parent=42 // loop_footer_branch
                  %357 = sbr.rel target = $region52
                $region57: #{tpu_custom_call.1} parent=42 // loop_exit
                  _
              $region43: #{tpu_custom_call.1} parent=27 // pred_fallthru
                _
              %p379 = pneg %p177
              // Predicated region
              $region58: #{tpu_custom_call.1} parent=27 // pred_check
                _
              $region59: #{tpu_custom_call.1} parent=27 // pred_check_branch
                %381 = sbr.rel (%p177) target = $region61
              $region60: #{tpu_custom_call.1} parent=27 // pred_region
                %s382 = sand.u32 %s150, 7
                %s383 = ssub.s32 %s150, %s382
                %s384 = scalar_lea.vmem %s149, %s383
                %s385 = ssub.s32 %s150, %s382
                %s386 = scalar_lea.vmem %s139, %s385 [#allocation5]
                %s387 = sshrl.u32 %s150, 3
                %s388 = sdiv.u32.pop %s387, 24
                %s389 = srem.u32.pop %s387, 24
                // While loop
                $region62: #{tpu_custom_call.1} parent=60 // loop_pre_header
                  _
                $region63: #{tpu_custom_call.1} parent=60 // loop_header
                  %s393 = sphi 0, %s395
                  %p394 = scmp.ge.s32.totalorder %s393, %s388
                  %s398 = sphi 0, %s547
                  %s399 = sphi %s149, %s550
                  %s400 = sphi %s139, %s551
                $region64: #{tpu_custom_call.1} parent=60 // loop_header_branch
                  %397 = sbr.rel (%p394) target = $region68
                $region65: #{tpu_custom_call.1} parent=60 // loop_body
                  %v401 = vld [vmem:[%s399] sm:$0xff]
                  %402 = vst [vmem:[%s400] sm:$0xff] %v401
                  %v403 = vld [vmem:[%s399 + $0x8] sm:$0xff]
                  %404 = vst [vmem:[%s400 + $0x8] sm:$0xff] %v403
                  %v405 = vld [vmem:[%s399 + $0x10] sm:$0xff]
                  %406 = vst [vmem:[%s400 + $0x10] sm:$0xff] %v405
                  %v407 = vld [vmem:[%s399 + $0x18] sm:$0xff]
                  %408 = vst [vmem:[%s400 + $0x18] sm:$0xff] %v407
                  %v409 = vld [vmem:[%s399 + $0x20] sm:$0xff]
                  %410 = vst [vmem:[%s400 + $0x20] sm:$0xff] %v409
                  %v411 = vld [vmem:[%s399 + $0x28] sm:$0xff]
                  %412 = vst [vmem:[%s400 + $0x28] sm:$0xff] %v411
                  %v413 = vld [vmem:[%s399 + $0x30] sm:$0xff]
                  %414 = vst [vmem:[%s400 + $0x30] sm:$0xff] %v413
                  %v415 = vld [vmem:[%s399 + $0x38] sm:$0xff]
                  %416 = vst [vmem:[%s400 + $0x38] sm:$0xff] %v415
                  %v417 = vld [vmem:[%s399 + $0x40] sm:$0xff]
                  %418 = vst [vmem:[%s400 + $0x40] sm:$0xff] %v417
                  %v419 = vld [vmem:[%s399 + $0x48] sm:$0xff]
                  %420 = vst [vmem:[%s400 + $0x48] sm:$0xff] %v419
                  %v421 = vld [vmem:[%s399 + $0x50] sm:$0xff]
                  %422 = vst [vmem:[%s400 + $0x50] sm:$0xff] %v421
                  %v423 = vld [vmem:[%s399 + $0x58] sm:$0xff]
                  %424 = vst [vmem:[%s400 + $0x58] sm:$0xff] %v423
                  %v425 = vld [vmem:[%s399 + $0x60] sm:$0xff]
                  %426 = vst [vmem:[%s400 + $0x60] sm:$0xff] %v425
                  %v427 = vld [vmem:[%s399 + $0x68] sm:$0xff]
                  %428 = vst [vmem:[%s400 + $0x68] sm:$0xff] %v427
                  %v429 = vld [vmem:[%s399 + $0x70] sm:$0xff]
                  %430 = vst [vmem:[%s400 + $0x70] sm:$0xff] %v429
                  %v431 = vld [vmem:[%s399 + $0x78] sm:$0xff]
                  %432 = vst [vmem:[%s400 + $0x78] sm:$0xff] %v431
                  %v433 = vld [vmem:[%s399 + $0x80] sm:$0xff]
                  %434 = vst [vmem:[%s400 + $0x80] sm:$0xff] %v433
                  %v435 = vld [vmem:[%s399 + $0x88] sm:$0xff]
                  %436 = vst [vmem:[%s400 + $0x88] sm:$0xff] %v435
                  %v437 = vld [vmem:[%s399 + $0x90] sm:$0xff]
                  %438 = vst [vmem:[%s400 + $0x90] sm:$0xff] %v437
                  %v439 = vld [vmem:[%s399 + $0x98] sm:$0xff]
                  %440 = vst [vmem:[%s400 + $0x98] sm:$0xff] %v439
                  %v441 = vld [vmem:[%s399 + $0xa0] sm:$0xff]
                  %442 = vst [vmem:[%s400 + $0xa0] sm:$0xff] %v441
                  %v443 = vld [vmem:[%s399 + $0xa8] sm:$0xff]
                  %444 = vst [vmem:[%s400 + $0xa8] sm:$0xff] %v443
                  %v445 = vld [vmem:[%s399 + $0xb0] sm:$0xff]
                  %446 = vst [vmem:[%s400 + $0xb0] sm:$0xff] %v445
                  %v447 = vld [vmem:[%s399 + $0xb8] sm:$0xff]
                  %448 = vst [vmem:[%s400 + $0xb8] sm:$0xff] %v447
                  %v449 = vld [vmem:[%s399 + $0x28] sm:$0xff]
                  %450 = vst [vmem:[%s400 + $0x10] sm:$0xff] %v449
                  %v451 = vld [vmem:[%s399 + $0x30] sm:$0xff]
                  %452 = vst [vmem:[%s400 + $0x18] sm:$0xff] %v451
                  %v453 = vld [vmem:[%s399 + $0x38] sm:$0xff]
                  %454 = vst [vmem:[%s400 + $0x20] sm:$0xff] %v453
                  %v455 = vld [vmem:[%s399 + $0x40] sm:$0xff]
                  %456 = vst [vmem:[%s400 + $0x28] sm:$0xff] %v455
                  %v457 = vld [vmem:[%s399 + $0x48] sm:$0xff]
                  %458 = vst [vmem:[%s400 + $0x30] sm:$0xff] %v457
                  %v459 = vld [vmem:[%s399 + $0x50] sm:$0xff]
                  %460 = vst [vmem:[%s400 + $0x38] sm:$0xff] %v459
                  %v461 = vld [vmem:[%s399 + $0x58] sm:$0xff]
                  %462 = vst [vmem:[%s400 + $0x40] sm:$0xff] %v461
                  %v463 = vld [vmem:[%s399 + $0x60] sm:$0xff]
                  %464 = vst [vmem:[%s400 + $0x48] sm:$0xff] %v463
                  %v465 = vld [vmem:[%s399 + $0x68] sm:$0xff]
                  %466 = vst [vmem:[%s400 + $0x50] sm:$0xff] %v465
                  %v467 = vld [vmem:[%s399 + $0x70] sm:$0xff]
                  %468 = vst [vmem:[%s400 + $0x58] sm:$0xff] %v467
                  %v469 = vld [vmem:[%s399 + $0x78] sm:$0xff]
                  %470 = vst [vmem:[%s400 + $0x60] sm:$0xff] %v469
                  %v471 = vld [vmem:[%s399 + $0x80] sm:$0xff]
                  %472 = vst [vmem:[%s400 + $0x68] sm:$0xff] %v471
                  %v473 = vld [vmem:[%s399 + $0x88] sm:$0xff]
                  %474 = vst [vmem:[%s400 + $0x70] sm:$0xff] %v473
                  %v475 = vld [vmem:[%s399 + $0x90] sm:$0xff]
                  %476 = vst [vmem:[%s400 + $0x78] sm:$0xff] %v475
                  %v477 = vld [vmem:[%s399 + $0x98] sm:$0xff]
                  %478 = vst [vmem:[%s400 + $0x80] sm:$0xff] %v477
                  %v479 = vld [vmem:[%s399 + $0xa0] sm:$0xff]
                  %480 = vst [vmem:[%s400 + $0x88] sm:$0xff] %v479
                  %v481 = vld [vmem:[%s399 + $0xa8] sm:$0xff]
                  %482 = vst [vmem:[%s400 + $0x90] sm:$0xff] %v481
                  %v483 = vld [vmem:[%s399 + $0xb0] sm:$0xff]
                  %484 = vst [vmem:[%s400 + $0x98] sm:$0xff] %v483
                  %v485 = vld [vmem:[%s399 + $0xb8] sm:$0xff]
                  %486 = vst [vmem:[%s400 + $0xa0] sm:$0xff] %v485
                  %v487 = vld [vmem:[%s399 + $0xc0] sm:$0xff]
                  %488 = vst [vmem:[%s400 + $0xa8] sm:$0xff] %v487
                  %v489 = vld [vmem:[%s399 + $0xc8] sm:$0xff]
                  %490 = vst [vmem:[%s400 + $0xb0] sm:$0xff] %v489
                  %v491 = vld [vmem:[%s399 + $0xd0] sm:$0xff]
                  %492 = vst [vmem:[%s400 + $0xb8] sm:$0xff] %v491
                  %v493 = vld [vmem:[%s399 + $0xd8] sm:$0xff]
                  %494 = vst [vmem:[%s400 + $0xc0] sm:$0xff] %v493
                  %v495 = vld [vmem:[%s399 + $0xe0] sm:$0xff]
                  %496 = vst [vmem:[%s400 + $0xc8] sm:$0xff] %v495
                  %v497 = vld [vmem:[%s399 + $0x50] sm:$0xff]
                  %498 = vst [vmem:[%s400 + $0x20] sm:$0xff] %v497
                  %v499 = vld [vmem:[%s399 + $0x58] sm:$0xff]
                  %500 = vst [vmem:[%s400 + $0x28] sm:$0xff] %v499
                  %v501 = vld [vmem:[%s399 + $0x60] sm:$0xff]
                  %502 = vst [vmem:[%s400 + $0x30] sm:$0xff] %v501
                  %v503 = vld [vmem:[%s399 + $0x68] sm:$0xff]
                  %504 = vst [vmem:[%s400 + $0x38] sm:$0xff] %v503
                  %v505 = vld [vmem:[%s399 + $0x70] sm:$0xff]
                  %506 = vst [vmem:[%s400 + $0x40] sm:$0xff] %v505
                  %v507 = vld [vmem:[%s399 + $0x78] sm:$0xff]
                  %508 = vst [vmem:[%s400 + $0x48] sm:$0xff] %v507
                  %v509 = vld [vmem:[%s399 + $0x80] sm:$0xff]
                  %510 = vst [vmem:[%s400 + $0x50] sm:$0xff] %v509
                  %v511 = vld [vmem:[%s399 + $0x88] sm:$0xff]
                  %512 = vst [vmem:[%s400 + $0x58] sm:$0xff] %v511
                  %v513 = vld [vmem:[%s399 + $0x90] sm:$0xff]
                  %514 = vst [vmem:[%s400 + $0x60] sm:$0xff] %v513
                  %v515 = vld [vmem:[%s399 + $0x98] sm:$0xff]
                  %516 = vst [vmem:[%s400 + $0x68] sm:$0xff] %v515
                  %v517 = vld [vmem:[%s399 + $0xa0] sm:$0xff]
                  %518 = vst [vmem:[%s400 + $0x70] sm:$0xff] %v517
                  %v519 = vld [vmem:[%s399 + $0xa8] sm:$0xff]
                  %520 = vst [vmem:[%s400 + $0x78] sm:$0xff] %v519
                  %v521 = vld [vmem:[%s399 + $0xb0] sm:$0xff]
                  %522 = vst [vmem:[%s400 + $0x80] sm:$0xff] %v521
                  %v523 = vld [vmem:[%s399 + $0xb8] sm:$0xff]
                  %524 = vst [vmem:[%s400 + $0x88] sm:$0xff] %v523
                  %v525 = vld [vmem:[%s399 + $0xc0] sm:$0xff]
                  %526 = vst [vmem:[%s400 + $0x90] sm:$0xff] %v525
                  %v527 = vld [vmem:[%s399 + $0xc8] sm:$0xff]
                  %528 = vst [vmem:[%s400 + $0x98] sm:$0xff] %v527
                  %v529 = vld [vmem:[%s399 + $0xd0] sm:$0xff]
                  %530 = vst [vmem:[%s400 + $0xa0] sm:$0xff] %v529
                  %v531 = vld [vmem:[%s399 + $0xd8] sm:$0xff]
                  %532 = vst [vmem:[%s400 + $0xa8] sm:$0xff] %v531
                  %v533 = vld [vmem:[%s399 + $0xe0] sm:$0xff]
                  %534 = vst [vmem:[%s400 + $0xb0] sm:$0xff] %v533
                  %v535 = vld [vmem:[%s399 + $0xe8] sm:$0xff]
                  %536 = vst [vmem:[%s400 + $0xb8] sm:$0xff] %v535
                  %v537 = vld [vmem:[%s399 + $0xf0] sm:$0xff]
                  %538 = vst [vmem:[%s400 + $0xc0] sm:$0xff] %v537
                  %v539 = vld [vmem:[%s399 + $0xf8] sm:$0xff]
                  %540 = vst [vmem:[%s400 + $0xc8] sm:$0xff] %v539
                  %v541 = vld [vmem:[%s399 + $0x100] sm:$0xff]
                  %542 = vst [vmem:[%s400 + $0xd0] sm:$0xff] %v541
                  %v543 = vld [vmem:[%s399 + $0x108] sm:$0xff]
                  %544 = vst [vmem:[%s400 + $0xd8] sm:$0xff] %v543
                  %s545 = sadd.s32 1, %s398
                  %p546 = scmp.ge.s32.totalorder %s545, %s388
                  %s547 = scalar_select %p546, 0, %s545
                  %s548 = smul.u32 %s547, 192
                  %s549 = smul.u32 %s547, 192
                  %s550 = scalar_lea.vmem %s149, %s548
                  %s551 = scalar_lea.vmem %s139, %s549 [#allocation5]
                $region66: #{tpu_custom_call.1} parent=60 // loop_footer
                  %s395 = sadd.s32 %s393, 1
                $region67: #{tpu_custom_call.1} parent=60 // loop_footer_branch
                  %392 = sbr.rel target = $region63
                $region68: #{tpu_custom_call.1} parent=60 // loop_exit
                  _
                %s552 = sdiv.u32.pop %s387, 24
                %s553 = srem.u32.pop %s387, 24
                %s554 = smul.u32 %s552, 24
                %s555 = smul.u32 128, %s554
                %s556 = sshra.s32 %s555, 4
                %s557 = scalar_lea.vmem %s149, %s556
                %s558 = smul.u32 128, %s554
                %s559 = sshra.s32 %s558, 4
                %s560 = scalar_lea.vmem %s139, %s559 [#allocation5]
                // While loop
                $region69: #{tpu_custom_call.1} parent=60 // loop_pre_header
                  _
                $region70: #{tpu_custom_call.1} parent=60 // loop_header
                  %s564 = sphi 0, %s566
                  %p565 = scmp.ge.s32.totalorder %s564, %s553
                  %s569 = sphi 0, %s580
                  %s570 = sphi %s557, %s583
                  %s571 = sphi %s560, %s584
                $region71: #{tpu_custom_call.1} parent=60 // loop_header_branch
                  %568 = sbr.rel (%p565) target = $region75
                $region72: #{tpu_custom_call.1} parent=60 // loop_body
                  %v572 = vld [vmem:[%s570] sm:$0xff]
                  %573 = vst [vmem:[%s571] sm:$0xff] %v572
                  %v574 = vld [vmem:[%s570 + $0x28] sm:$0xff]
                  %575 = vst [vmem:[%s571 + $0x10] sm:$0xff] %v574
                  %v576 = vld [vmem:[%s570 + $0x50] sm:$0xff]
                  %577 = vst [vmem:[%s571 + $0x20] sm:$0xff] %v576
                  %s578 = sadd.s32 1, %s569
                  %p579 = scmp.ge.s32.totalorder %s578, %s553
                  %s580 = scalar_select %p579, 0, %s578
                  %s581 = smul.u32 %s580, 8
                  %s582 = smul.u32 %s580, 8
                  %s583 = scalar_lea.vmem %s557, %s581
                  %s584 = scalar_lea.vmem %s560, %s582 [#allocation5]
                $region73: #{tpu_custom_call.1} parent=60 // loop_footer
                  %s566 = sadd.s32 %s564, 1
                $region74: #{tpu_custom_call.1} parent=60 // loop_footer_branch
                  %563 = sbr.rel target = $region70
                $region75: #{tpu_custom_call.1} parent=60 // loop_exit
                  _
                %s585 = sshllo.u32 0, %s382
                loop: start=0, step=1, limit=1
                $region76: #{tpu_custom_call.1} parent=60 // loop_pre_header
                  _
                $region77: #{tpu_custom_call.1} parent=60 // loop_header
                  %s587 = sphi 0, %s591
                  %p588 = scmp.ge.s32.totalorder %s587, 1
                  %s592 = sphi %s384, %s384
                  %s593 = sphi %s386, %s386
                $region78: #{tpu_custom_call.1} parent=60 // loop_header_branch
                  %590 = sbr.rel (%p588) target = $region82
                $region79: #{tpu_custom_call.1} parent=60 // loop_body
                  %v594 = vld [vmem:[%s592] sm:%s585]
                  %595 = vst [vmem:[%s593] sm:%s585] %v594
                  %v596 = vld [vmem:[%s592 + $0x28] sm:%s585]
                  %597 = vst [vmem:[%s593 + $0x10] sm:%s585] %v596
                  %v598 = vld [vmem:[%s592 + $0x50] sm:%s585]
                  %599 = vst [vmem:[%s593 + $0x20] sm:%s585] %v598
                $region80: #{tpu_custom_call.1} parent=60 // loop_footer
                  %s591 = sadd.s32 1, %s587
                $region81: #{tpu_custom_call.1} parent=60 // loop_footer_branch
                  %586 = sbr.rel target = $region77
                $region82: #{tpu_custom_call.1} parent=60 // loop_exit
                  _
              $region61: #{tpu_custom_call.1} parent=27 // pred_fallthru
                _
            $region28: #{tpu_custom_call.1} parent=23 // pred_fallthru
              _
            // Predicated region
            $region29: #{tpu_custom_call.1} parent=23 // pred_check
              %p158 = pneg %p154
            $region30: #{tpu_custom_call.1} parent=23 // pred_check_branch
              %160 = sbr.rel (%p158) target = $region32
            $region31: #{tpu_custom_call.1} parent=23 // pred_region
              %s161 = sshllo.u32 0, %s150
              loop: start=0, step=1, limit=1
              $region33: #{tpu_custom_call.1} parent=31 // loop_pre_header
                _
              $region34: #{tpu_custom_call.1} parent=31 // loop_header
                %s163 = sphi 0, %s167
                %p164 = scmp.ge.s32.totalorder %s163, 1
                %s168 = sphi %s149, %s149
                %s169 = sphi %s139, %s139
              $region35: #{tpu_custom_call.1} parent=31 // loop_header_branch
                %166 = sbr.rel (%p164) target = $region39
              $region36: #{tpu_custom_call.1} parent=31 // loop_body
                %v170 = vld [vmem:[%s168] sm:%s161]
                %171 = vst [vmem:[%s169] sm:%s161] %v170
                %v172 = vld [vmem:[%s168 + $0x28] sm:%s161]
                %173 = vst [vmem:[%s169 + $0x10] sm:%s161] %v172
                %v174 = vld [vmem:[%s168 + $0x50] sm:%s161]
                %175 = vst [vmem:[%s169 + $0x20] sm:%s161] %v174
              $region37: #{tpu_custom_call.1} parent=31 // loop_footer
                %s167 = sadd.s32 1, %s163
              $region38: #{tpu_custom_call.1} parent=31 // loop_footer_branch
                %162 = sbr.rel target = $region34
              $region39: #{tpu_custom_call.1} parent=31 // loop_exit
                _
            $region32: #{tpu_custom_call.1} parent=23 // pred_fallthru
              _
          $region24: #{tpu_custom_call.1} parent=19 // pred_fallthru
            _
          %600 = vnop
        $region20: #{tpu_custom_call.1} parent=15 // pred_fallthru
          _
        // Predicated region
        $region83: #{tpu_custom_call.1} parent=15 // pred_check
          %p601 = pneg %p80
        $region84: #{tpu_custom_call.1} parent=15 // pred_check_branch
          %603 = sbr.rel (%p601) target = $region86
        $region85: #{tpu_custom_call.1} parent=15 // pred_region
          %s604 = smul.u32 2, %s20
          %s605 = ssub.s32 5, %s604
          %p606 = scmp.lt.s32.totalorder %s605, 2
          %s607 = scalar_select %p606, %s605, 2
          %s608 = smul.u32 16, %s607
          %p609 = scmp.lt.s32.totalorder %s18, 1
          %s610 = scalar_select %p609, %s18, 1
          %p611 = scmp.lt.s32.totalorder %s604, 4
          %s612 = scalar_select %p611, %s604, 4
          %s613 = smul.addr %s610, 5
          %s614 = sadd.s32 %s612, %s613
          %s615 = scalar_lea.vmem %s1, %s614
          %s616 = smul.u32 2, %s20
          %s617 = ssub.s32 5, %s616
          %p618 = scmp.lt.s32.totalorder %s617, 2
          %s619 = scalar_select %p618, %s617, 2
          %s620 = smul.u32 16, %s619
        $region86: #{tpu_custom_call.1} parent=15 // pred_fallthru
          _
      $region16: #{tpu_custom_call.1} parent=5 // pred_fallthru
        _
      %p621 = scmp.le.s32.totalorder 1, %s11
      %p622 = scmp.lt.s32.totalorder %s11, 7
      %p623 = pnand %p621, %p622
      %p624 = pneg %p623
      // Predicated region
      $region87: #{tpu_custom_call.1} parent=5 // pred_check
        _
      $region88: #{tpu_custom_call.1} parent=5 // pred_check_branch
        %626 = sbr.rel (%p623) target = $region90
      $region89: #{tpu_custom_call.1} parent=5 // pred_region
        %s627 = ssub.s32 %s11, 1
        %s628 = sand.u32 %s45, 1
        %s629 = sand.u32 %s45, 1
        %s630 = smul.addr %s629, 48
        %s631 = scalar_lea.vmem [#allocation5], %s630
        // Predicated region
        $region91: #{tpu_custom_call.1} parent=89 // pred_check
          %p632 = pneg %p58
        $region92: #{tpu_custom_call.1} parent=89 // pred_check_branch
          %634 = sbr.rel (%p632) target = $region94
        $region93: #{tpu_custom_call.1} parent=89 // pred_region
          _
        $region94: #{tpu_custom_call.1} parent=89 // pred_fallthru
          _
        %s635 = sand.u32 %s45, 1
        %s636 = sand.u32 %s45, 1
        %s637 = smul.addr %s636, 48
        %s638 = scalar_lea.vmem [#allocation5], %s637
        %p639 = pneg %p58
        %p640 = pneg %p55
        %s641 = smul.u32 2, %s23
        %s642 = ssub.s32 5, %s641
        %p643 = scmp.lt.s32.totalorder %s642, 2
        %s644 = scalar_select %p643, %s642, 2
        %s645 = smul.u32 16, %s644
        %p646 = scmp.lt.s32.totalorder %s21, 1
        %s647 = scalar_select %p646, %s21, 1
        %p648 = scmp.lt.s32.totalorder %s641, 4
        %s649 = scalar_select %p648, %s641, 4
        %s650 = smul.addr %s647, 5
        %s651 = sadd.s32 %s649, %s650
        %s652 = scalar_lea.vmem %s1, %s651
        %p653 = pneg %p86
        %p654 = pneg %p83
        %p655 = pneg %p114
        %p656 = pneg %p111
        %s657 = sand.u32 %s101, 1
        %s658 = scalar_lea.sflag [#allocation7], %s657
        %s659 = sand.u32 %s101, 1
        %s660 = smul.addr %s659, 8
        %s661 = scalar_lea.vmem [#allocation6], %s660
        %s662 = smul.u32 2, %s23
        %s663 = ssub.s32 5, %s662
        %p664 = scmp.lt.s32.totalorder %s663, 2
        %s665 = scalar_select %p664, %s663, 2
        %s666 = smul.u32 384, %s665
        %s667 = smul.u32 2, %s23
        %s668 = ssub.s32 5, %s667
        %p669 = scmp.lt.s32.totalorder %s668, 2
        %s670 = scalar_select %p669, %s668, 2
        %s671 = smul.u32 16, %s670
        %p672 = scmp.lt.s32.totalorder %s21, 1
        %s673 = scalar_select %p672, %s21, 1
        %p674 = scmp.lt.s32.totalorder %s667, 4
        %s675 = scalar_select %p674, %s667, 4
        %s676 = smul.addr %s673, 5
        %s677 = sadd.s32 %s675, %s676
        %s678 = scalar_lea.vmem %s1, %s677
        %s679 = smul.u32 2, %s23
        %s680 = ssub.s32 5, %s679
        %p681 = scmp.lt.s32.totalorder %s680, 2
        %s682 = scalar_select %p681, %s680, 2
        %s683 = smul.u32 16, %s682
        %p684 = scmp.eq.s32.totalorder %s23, 0
        // Predicated region
        $region95: #{tpu_custom_call.1} parent=89 // pred_check
          %p685 = pneg %p684
        $region96: #{tpu_custom_call.1} parent=89 // pred_check_branch
          %687 = sbr.rel (%p685) target = $region98
        $region97: #{tpu_custom_call.1} parent=89 // pred_region
          %v688 = vlaneseq
          %vm689 = vcmp.ge.s32.totalorder %v688, 0
          %vm690 = vcmp.lt.s32.totalorder %v688, 256
          %vm691 = vmand %vm689, %vm690
          %692 = vst.msk [vmem:[#allocation2] sm:$0x3] %vm691, 0.0
          %693 = vst.msk [vmem:[#allocation3] sm:$0x3] %vm691, 0.0
          %694 = vst.msk [vmem:[#allocation4] sm:$0x3] %vm691, 0.0
        $region98: #{tpu_custom_call.1} parent=89 // pred_fallthru
          _
        %v695 = vld [vmem:[%s631] sm:$0xff]
        %v696 = vld [vmem:[%s631 + $0x8] sm:$0xff]
        %v697 = vld [vmem:[%s631 + $0x10] sm:$0xff]
        %v698 = vld [vmem:[%s631 + $0x18] sm:$0xff]
        %v699 = vld [vmem:[%s631 + $0x20] sm:$0x1f]
        %v700 = vld [vmem:[%s631 + $0x28] sm:$0x1f]
        %v701 = vld [vmem:[%s678] sm:$0x3]
        %s702 = smul.u32 %s22, 3
        %s703 = sadd.s32 %s702, %s23
        %s704 = smul.u32 %s703, 256
        %v705 = vlaneseq
        %v706 = vand.u32 %v705, 127
        %v707 = vadd.s32 %v706, 128
        %v708 = vstv %s704
        %v709 = vadd.s32 %v708, %v706
        %v710 = vadd.s32 %v708, %v707
        %vm711 = vcmp.lt.s32.totalorder %v709, 576
        %vm712 = vcmp.lt.s32.totalorder %v710, 576
        %v713 = vsel %vm711, 1, 0
        %v714 = vsel %vm712, 1, 0
        %v715 = vcvt.s32.f32 %v713
        %v716 = vcvt.s32.f32 %v714
        %vm717 = vcmp.eq.s32.totalorder %v713, 1
        %vm718 = vcmp.eq.s32.totalorder %v714, 1
        %v719 = vsel %vm717, %v695, 0.0
        %v720 = vsel %vm718, %v696, 0.0
        %v721 = vsel %vm717, %v697, 0.0
        %v722 = vsel %vm718, %v698, 0.0
        %v723 = vsel %vm717, %v699, 0.0
        %v724 = vsel %vm718, %v700, 0.0
        %vm725 = vcmask 1044480
        %v726 = vsel %vm725, %v723, -inf
        %v727 = vmax.f32 %v719, %v726
        %v728 = vmax.f32 %v727, %v721
        %v729 = vrot.slane %v728, 4
        %v730 = vmax.f32 %v728, %v729
        %v731 = vrot.slane %v730, 2
        %v732 = vmax.f32 %v730, %v731
        %v733 = vrot.slane %v732, 1
        %v734 = vmax.f32 %v732, %v733
        %v735 = vsel %vm725, %v724, -inf
        %v736 = vmax.f32 %v720, %v735
        %v737 = vmax.f32 %v736, %v722
        %v738 = vrot.slane %v737, 4
        %v739 = vmax.f32 %v737, %v738
        %v740 = vrot.slane %v739, 2
        %v741 = vmax.f32 %v739, %v740
        %v742 = vrot.slane %v741, 1
        %v743 = vmax.f32 %v741, %v742
        %v744 = vsub.f32 %v719, %v734
        %v745 = vsub.f32 %v720, %v743
        %v746 = vsub.f32 %v721, %v734
        %v747 = vsub.f32 %v722, %v743
        %v748 = vsub.f32 %v723, %v734
        %v749 = vsub.f32 %v724, %v743
        %v750 = vmul.f32 %v744, 1.442695
        %v751 = vpow.pop %v750
        %v752 = vmul.f32 %v745, 1.442695
        %v753 = vpow.pop %v752
        %v754 = vmul.f32 %v746, 1.442695
        %v755 = vpow.pop %v754
        %v756 = vmul.f32 %v747, 1.442695
        %v757 = vpow.pop %v756
        %v758 = vmul.f32 %v748, 1.442695
        %v759 = vpow.pop %v758
        %v760 = vmul.f32 %v749, 1.442695
        %v761 = vpow.pop %v760
        %v762 = vadd.f32 %v751, %v755
        %v763 = vsel %vm725, %v759, 0.0
        %v764 = vadd.f32 %v762, %v763
        %v765 = vrot.slane %v764, 4
        %v766 = vadd.f32 %v764, %v765
        %v767 = vrot.slane %v766, 2
        %v768 = vadd.f32 %v766, %v767
        %v769 = vrot.slane %v768, 1
        %v770 = vadd.f32 %v768, %v769
        %v771 = vadd.f32 %v753, %v757
        %v772 = vsel %vm725, %v761, 0.0
        %v773 = vadd.f32 %v771, %v772
        %v774 = vrot.slane %v773, 4
        %v775 = vadd.f32 %v773, %v774
        %v776 = vrot.slane %v775, 2
        %v777 = vadd.f32 %v775, %v776
        %v778 = vrot.slane %v777, 1
        %v779 = vadd.f32 %v777, %v778
        %v780 = vlaneseq
        %v781 = vshrl.u32 %v780, 7
        %v782 = vadd.s32 %v781, 8
        %v783 = vadd.s32 %v781, 16
        %v784 = vlaneseq
        %v785 = vshrl.u32 %v784, 7
        %v786 = vsub.s32 0, %v785
        %v787 = vrot.slane %v701, %v786
        %v788 = vlaneseq
        %v789 = vshrl.u32 %v788, 7
        %v790 = vsub.s32 1, %v789
        %v791 = vrot.slane %v701, %v790
        %vm792 = vcmp.eq.s32.totalorder %v781, %v787
        %vm793 = vcmp.eq.s32.totalorder %v781, %v791
        %vm794 = vcmp.eq.s32.totalorder %v782, %v787
        %vm795 = vcmp.eq.s32.totalorder %v782, %v791
        %vm796 = vcmp.eq.s32.totalorder %v783, %v787
        %vm797 = vcmp.eq.s32.totalorder %v783, %v791
        %v798 = vsel %vm792, %v751, 0.0
        %v799 = vsel %vm793, %v753, 0.0
        %v800 = vsel %vm794, %v755, 0.0
        %v801 = vsel %vm795, %v757, 0.0
        %v802 = vsel %vm796, %v759, 0.0
        %v803 = vsel %vm797, %v761, 0.0
        %v804 = vadd.f32 %v798, %v800
        %v805 = vsel %vm725, %v802, 0.0
        %v806 = vadd.f32 %v804, %v805
        %v807 = vrot.slane %v806, 4
        %v808 = vadd.f32 %v806, %v807
        %v809 = vrot.slane %v808, 2
        %v810 = vadd.f32 %v808, %v809
        %v811 = vrot.slane %v810, 1
        %v812 = vadd.f32 %v810, %v811
        %v813 = vadd.f32 %v799, %v801
        %v814 = vsel %vm725, %v803, 0.0
        %v815 = vadd.f32 %v813, %v814
        %v816 = vrot.slane %v815, 4
        %v817 = vadd.f32 %v815, %v816
        %v818 = vrot.slane %v817, 2
        %v819 = vadd.f32 %v817, %v818
        %v820 = vrot.slane %v819, 1
        %v821 = vadd.f32 %v819, %v820
        %v822 = vrcp.pop %v770
        %v823 = vrcp.pop %v779
        %v824 = vmul.f32 %v770, %v822
        %v825 = vmul.f32 %v779, %v823
        %v826 = vsub.f32 2.0, %v824
        %v827 = vsub.f32 2.0, %v825
        %v828 = vmul.f32 %v822, %v826
        %v829 = vmul.f32 %v823, %v827
        %v830 = vmul.f32 %v828, %v715
        %v831 = vmul.f32 %v829, %v716
        %v832 = vld [vmem:[#allocation2] sm:$0x3]
        %v833 = vmul.f32 %v812, %v830
        %v834 = vmul.f32 %v821, %v831
        %v837 = vcombine.low %v833, %v834
        %v839 = vunpack.c.l.s4 1966171168
        %v840 = vunpack.c.0.s8 %v839
        %v841 = vlaneseq
        %v842 = vshrl.u32 %v841, 7
        %v843 = vsub.s32 %v840, %v842
        %v844 = vrot.slane %v837, %v843
        %v846 = vunpack.c.l.s4 1966171168
        %v847 = vunpack.c.0.s8 %v846
        %v848 = vlaneseq
        %v849 = vshrl.u32 %v848, 7
        %v850 = vsub.s32 %v847, %v849
        %v851 = vrot.slane %v844, %v850
        %v853 = vadd.f32 %v832, %v851
        %v854 = vlaneseq
        %vm855 = vcmp.ge.s32.totalorder %v854, 0
        %vm856 = vcmp.lt.s32.totalorder %v854, 256
        %vm857 = vmand %vm855, %vm856
        %858 = vst.msk [vmem:[#allocation2] sm:$0x3] %vm857, %v853
        %v859 = vld [vmem:[#allocation3] sm:$0x3]
        %v860 = vmul.f32 %v770, %v830
        %v861 = vmul.f32 %v779, %v831
        %v864 = vcombine.low %v860, %v861
        %v866 = vunpack.c.l.s4 1966171168
        %v867 = vunpack.c.0.s8 %v866
        %v868 = vlaneseq
        %v869 = vshrl.u32 %v868, 7
        %v870 = vsub.s32 %v867, %v869
        %v871 = vrot.slane %v864, %v870
        %v873 = vunpack.c.l.s4 1966171168
        %v874 = vunpack.c.0.s8 %v873
        %v875 = vlaneseq
        %v876 = vshrl.u32 %v875, 7
        %v877 = vsub.s32 %v874, %v876
        %v878 = vrot.slane %v871, %v877
        %v880 = vadd.f32 %v859, %v878
        %881 = vst.msk [vmem:[#allocation3] sm:$0x3] %vm857, %v880
        %v882 = vld [vmem:[#allocation4] sm:$0x3]
        %vm883 = vcmp.ge.s32.totalorder %v701, 0
        %vm884 = vcmp.lt.s32.totalorder %v701, 21
        %vm885 = vmand %vm883, %vm884
        %v886 = vcombine.low %v713, %v714
        %v888 = vunpack.c.l.s4 1966171168
        %v889 = vunpack.c.0.s8 %v888
        %v890 = vlaneseq
        %v891 = vshrl.u32 %v890, 7
        %v892 = vsub.s32 %v889, %v891
        %v893 = vrot.slane %v886, %v892
        %v895 = vunpack.c.l.s4 1966171168
        %v896 = vunpack.c.0.s8 %v895
        %v897 = vlaneseq
        %v898 = vshrl.u32 %v897, 7
        %v899 = vsub.s32 %v896, %v898
        %v900 = vrot.slane %v893, %v899
        %vm901 = vcmp.ne.s32.totalorder %v900, 0
        %vm902 = vmand %vm885, %vm901
        %v903 = vsel %vm902, 1.0, 0.0
        %v904 = vadd.f32 %v882, %v903
        %905 = vst.msk [vmem:[#allocation4] sm:$0x3] %vm857, %v904
        %p906 = scmp.eq.s32.totalorder %s23, 2
        // Predicated region
        $region99: #{tpu_custom_call.1} parent=89 // pred_check
          %p907 = pneg %p906
        $region100: #{tpu_custom_call.1} parent=89 // pred_check_branch
          %909 = sbr.rel (%p907) target = $region102
        $region101: #{tpu_custom_call.1} parent=89 // pred_region
          %v910 = vld [vmem:[#allocation2] sm:$0x3]
          %v912 = vlaneseq
          %v913 = vshrl.u32 %v912, 7
          %v914 = vsub.s32 0, %v913
          %v915 = vrot.slane %v910, %v914
          %v916 = vlaneseq
          %v917 = vshrl.u32 %v916, 7
          %v918 = vsub.s32 1, %v917
          %v919 = vrot.slane %v910, %v918
          %vm922 = vcmask 1040384
          %v923 = vsel %vm922, %v915, 0.0
          %v924 = vsel %vm922, %v919, 0.0
          %v925 = vadd.f32 %v923, %v924
          %926 = vadd.xlane.f32.xlu0 %v925
          %v927 = vpop.xlane.xlu0 %926
          %v928 = vrot.slane %v927, 4
          %v929 = vadd.f32 %v927, %v928
          %v930 = vrot.slane %v929, 2
          %v931 = vadd.f32 %v929, %v930
          %v932 = vrot.slane %v931, 1
          %v933 = vadd.f32 %v931, %v932
          %s934 = vtos %v933
          %v935 = vld [vmem:[#allocation3] sm:$0x3]
          %v937 = vlaneseq
          %v938 = vshrl.u32 %v937, 7
          %v939 = vsub.s32 0, %v938
          %v940 = vrot.slane %v935, %v939
          %v941 = vlaneseq
          %v942 = vshrl.u32 %v941, 7
          %v943 = vsub.s32 1, %v942
          %v944 = vrot.slane %v935, %v943
          %v947 = vsel %vm922, %v940, 0.0
          %v948 = vsel %vm922, %v944, 0.0
          %v949 = vadd.f32 %v947, %v948
          %950 = vadd.xlane.f32.xlu0 %v949
          %v951 = vpop.xlane.xlu0 %950
          %v952 = vrot.slane %v951, 4
          %v953 = vadd.f32 %v951, %v952
          %v954 = vrot.slane %v953, 2
          %v955 = vadd.f32 %v953, %v954
          %v956 = vrot.slane %v955, 1
          %v957 = vadd.f32 %v955, %v956
          %s958 = vtos %v957
          %v959 = vld [vmem:[#allocation4] sm:$0x3]
          %v961 = vlaneseq
          %v962 = vshrl.u32 %v961, 7
          %v963 = vsub.s32 0, %v962
          %v964 = vrot.slane %v959, %v963
          %v965 = vlaneseq
          %v966 = vshrl.u32 %v965, 7
          %v967 = vsub.s32 1, %v966
          %v968 = vrot.slane %v959, %v967
          %v971 = vsel %vm922, %v964, 0.0
          %v972 = vsel %vm922, %v968, 0.0
          %v973 = vadd.f32 %v971, %v972
          %974 = vadd.xlane.f32.xlu0 %v973
          %v975 = vpop.xlane.xlu0 %974
          %v976 = vrot.slane %v975, 4
          %v977 = vadd.f32 %v975, %v976
          %v978 = vrot.slane %v977, 2
          %v979 = vadd.f32 %v977, %v978
          %v980 = vrot.slane %v979, 1
          %v981 = vadd.f32 %v979, %v980
          %s982 = vtos %v981
          %vm983 = vcmp.eq.s32.totalorder %v781, 0
          %vm984 = vcmp.eq.s32.totalorder %v706, 0
          %vm985 = vmand %vm983, %vm984
          %v986 = vstv %s934
          %v987 = vsel %vm985, %v986, 0.0
          %vm988 = vcmp.eq.s32.totalorder %v706, 1
          %vm989 = vmand %vm983, %vm988
          %v990 = vstv %s958
          %v991 = vsel %vm989, %v990, 0.0
          %v992 = vadd.f32 %v987, %v991
          %vm993 = vcmp.eq.s32.totalorder %v706, 2
          %vm994 = vmand %vm983, %vm993
          %v995 = vstv %s982
          %v996 = vsel %vm994, %v995, 0.0
          %v997 = vadd.f32 %v992, %v996
          %998 = vst [vmem:[%s661] sm:$0xff] %v997
        $region102: #{tpu_custom_call.1} parent=89 // pred_fallthru
          _
        %s999 = sand.u32 %s101, 1
        %s1000 = scalar_lea.sflag [#allocation7], %s999
        %s1001 = sand.u32 %s101, 1
        %s1002 = smul.addr %s1001, 8
        %s1003 = scalar_lea.vmem [#allocation6], %s1002
        // Predicated region
        $region103: #{tpu_custom_call.1} parent=89 // pred_check
          %p1004 = pneg %p111
        $region104: #{tpu_custom_call.1} parent=89 // pred_check_branch
          %1006 = sbr.rel (%p1004) target = $region106
        $region105: #{tpu_custom_call.1} parent=89 // pred_region
          %s1008 = ssub.s32 128, 128
          %1009 = vsyncadd %s1000, %s1008
          %s1010 = sadd.s32 %s22, %s21
          %s1011 = smul.addr %s1010, 128
          %s1012 = scalar_lea.hbm %s2, %s1011
          %s1014 = sshll.u32 %s1003, 4
          %s1015 = int_to_ptr.vmem [resolvable:$true] %s1014
          %1017 = dma.vmem_to_hbm [thread:$0]  %s1015, 128, %s1012, %s1000
        $region106: #{tpu_custom_call.1} parent=89 // pred_fallthru
          _
      $region90: #{tpu_custom_call.1} parent=5 // pred_fallthru
        _
      %p1018 = scmp.le.s32.totalorder 2, %s11
      // Predicated region
      $region107: #{tpu_custom_call.1} parent=5 // pred_check
        %p1019 = pneg %p1018
      $region108: #{tpu_custom_call.1} parent=5 // pred_check_branch
        %1021 = sbr.rel (%p1019) target = $region110
      $region109: #{tpu_custom_call.1} parent=5 // pred_region
        %s1022 = ssub.s32 %s11, 2
        // Predicated region
        $region111: #{tpu_custom_call.1} parent=109 // pred_check
          %p1023 = pneg %p117
        $region112: #{tpu_custom_call.1} parent=109 // pred_check_branch
          %1025 = sbr.rel (%p1023) target = $region114
        $region113: #{tpu_custom_call.1} parent=109 // pred_region
          %s1026 = sand.u32 %s102, 1
          %s1027 = scalar_lea.sflag [#allocation7], %s1026
          %s1028 = sand.u32 %s102, 1
          %s1029 = smul.addr %s1028, 8
          %s1030 = scalar_lea.vmem [#allocation6], %s1029
          %1031 = dma.done %s1027, 128
        $region114: #{tpu_custom_call.1} parent=109 // pred_fallthru
          _
      $region110: #{tpu_custom_call.1} parent=5 // pred_fallthru
        _
    $region6: #{tpu_custom_call.1} parent=1 // loop_footer
      %s15 = sadd.s32 1, %s11
    $region7: #{tpu_custom_call.1} parent=1 // loop_footer_branch
      %10 = sbr.rel target = $region3
    $region8: #{tpu_custom_call.1} parent=1 // loop_exit
      _
    %1032 = vsyncpa [#allocation7], 1
    %s1033 = scalar_lea.sflag [#allocation7], 1
    %1034 = vsyncpa %s1033, 1

</llo_original>
